<compile_context>
chip_gen: v7x
topology: tpu7x:2x2x1
jax: 0.10.0
libtpu: 0.0.40
codegen_flags: <defaults>
</compile_context>

<pallas_src>
import functools

import jax
import jax.numpy as jnp
from jax.experimental import pallas as pl
from jax.experimental.pallas import tpu as pltpu

K = 5        # Conv1d kernel_size
PAD = 2      # Conv1d padding
EPS = 1e-5   # BatchNorm1d eps (PyTorch default)


# --------------------------------------------------------------------------------------
# In-kernel helpers
# --------------------------------------------------------------------------------------
def _conv_row(xc_ref, xl_ref, xr_ref, w_ref, xpad_ref, b, left_ok, right_ok, matmul_dtype):
    """Conv1d(k=5, p=2, no bias) for one batch row of the current (batch, L)-tile.

    xc_ref : (Bt, Cin, Lt)  current tile
    xl_ref : (Bt, Cin, H)   lane-aligned block ending exactly at this tile's start (or None)
    xr_ref : (Bt, Cin, H)   lane-aligned block starting exactly at this tile's end (or None)
    w_ref  : (K, Cout, Cin) conv weight, taps-major, already in matmul dtype
    xpad_ref: (Cin, Lt+2*PAD) VMEM scratch for the padded row (matmul dtype)

    Returns the (Cout, Lt) f32 pre-BN conv output.
    """
    lt = xc_ref.shape[2]
    cout = w_ref.shape[1]

    # Assemble the padded row in VMEM once (cast to the MXU operand dtype ONCE per row,
    # not per tap): body at lane offset PAD + two 2-lane halo writes.
    xpad_ref[:, PAD:PAD + lt] = xc_ref[b].astype(matmul_dtype)
    if xl_ref is None:
        # Single L-tile per row: the halo IS the conv zero-padding.
        zeros = jnp.zeros(xpad_ref.shape[:1] + (PAD,), matmul_dtype)
        xpad_ref[:, :PAD] = zeros
        xpad_ref[:, PAD + lt:] = zeros
    else:
        h = xl_ref.shape[2]
        lhalo = jnp.where(left_ok, xl_ref[b, :, h - PAD:], 0.0)   # last 2 cols of left blk
        rhalo = jnp.where(right_ok, xr_ref[b, :, :PAD], 0.0)      # first 2 cols of right blk
        xpad_ref[:, :PAD] = lhalo.astype(matmul_dtype)
        xpad_ref[:, PAD + lt:] = rhalo.astype(matmul_dtype)

    acc = jnp.zeros((cout, lt), jnp.float32)
    # K = 5 taps, static unroll.  Each tap: (Cout, Cin) @ (Cin, Lt) on the MXU, f32 acc.
    # TODO(synk): fold into one (Cout, K*Cin) @ (K*Cin, Lt) contraction (im2col stack);
    # saves MRF pops but adds a sublane relayout -- not the limiter for this HBM-bound op.
    for k in range(K):
        acc = acc + jnp.dot(w_ref[k], xpad_ref[:, k:k + lt],
                            preferred_element_type=jnp.float32)
    return acc


def _stats_kernel(*refs, matmul_dtype, has_halo):
    """Pass 1: per-block shifted first/second moments of the conv output (fully parallel)."""
    if has_halo:
        xc_ref, xl_ref, xr_ref, w_ref, stats_ref, xpad_ref = refs
    else:
        xc_ref, w_ref, stats_ref, xpad_ref = refs
        xl_ref = xr_ref = None

    lb = pl.program_id(1)
    n_l = pl.num_programs(1)
    left_ok = lb > 0
    right_ok = lb < n_l - 1
    bt = xc_ref.shape[0]

    shift_est = None   # per-block shift (first-row mean) -> avoids E[x^2]-E[x]^2 cancellation
    csum = None        # sum(y - shift)
    cssq = None        # sum((y - shift)^2)
    for b in range(bt):     # static unroll; Bt <= 8 so live ranges stay small
        acc = _conv_row(xc_ref, xl_ref, xr_ref, w_ref, xpad_ref,
                        b, left_ok, right_ok, matmul_dtype)        # (Cout, Lt) f32
        if b == 0:
            shift_est = jnp.mean(acc, axis=1, keepdims=True)       # (Cout, 1)
        d = acc - shift_est
        ds = jnp.sum(d, axis=1, keepdims=True)
        dss = jnp.sum(d * d, axis=1, keepdims=True)
        csum = ds if b == 0 else csum + ds
        cssq = dss if b == 0 else cssq + dss

    stats_ref[0, 0, :, 0:1] = shift_est
    stats_ref[0, 0, :, 1:2] = csum
    stats_ref[0, 0, :, 2:3] = cssq


def _apply_kernel(*refs, matmul_dtype, has_halo):
    """Pass 2: recompute conv, apply folded BN scale/shift, ReLU (fully parallel)."""
    if has_halo:
        xc_ref, xl_ref, xr_ref, w_ref, scale_ref, shift_ref, o_ref, xpad_ref = refs
    else:
        xc_ref, w_ref, scale_ref, shift_ref, o_ref, xpad_ref = refs
        xl_ref = xr_ref = None

    lb = pl.program_id(1)
    n_l = pl.num_programs(1)
    left_ok = lb > 0
    right_ok = lb < n_l - 1
    bt = xc_ref.shape[0]

    scale = scale_ref[...]          # (Cout, 1) fused BN scale
    shift = shift_ref[...]          # (Cout, 1) fused BN shift
    for b in range(bt):             # static unroll
        acc = _conv_row(xc_ref, xl_ref, xr_ref, w_ref, xpad_ref,
                        b, left_ok, right_ok, matmul_dtype)        # (Cout, Lt) f32
        y = acc * scale + shift                                    # single fused FMA pass
        o_ref[b] = jnp.maximum(y, 0.0).astype(o_ref.dtype)         # ReLU, lane-dense store


# --------------------------------------------------------------------------------------
# Wrapper
# --------------------------------------------------------------------------------------
def _vmem_limit_bytes():
    """Per-generation scoped-VMEM budget: physical capacity minus ~32 MiB headroom
    (=> ~96 MiB on v5e/v6e's 128 MiB parts, ~32 MiB on v7x's 64 MiB)."""
    cap = 64 * 1024 * 1024   # conservative default (v7x-class)
    try:
        cap = int(pltpu.get_tpu_info().vmem_capacity_bytes)
    except Exception:
        pass
    return min(max(32 * 1024 * 1024, cap - 32 * 1024 * 1024), 96 * 1024 * 1024)


def _pick_tiles(n, length, vmem_limit, batch_tile, l_tile):
    if batch_tile is None:
        batch_tile = next((c for c in (8, 4, 2, 1) if n % c == 0), 1)
    assert n % batch_tile == 0, "batch_tile must divide N"

    if l_tile is None:
        # Bigger L tiles where the VMEM budget allows (v5e/v6e); smaller on v7x.
        lt_target = 2048 if vmem_limit >= 64 * 1024 * 1024 else 1024
        if length <= lt_target:
            l_tile = length
        else:
            l_tile = length          # last resort: one full row per step
            for cand in range(lt_target, 127, -128):
                if length % cand == 0:
                    l_tile = cand
                    break
            # TODO(synk): remainder masking so L need not be divisible by a 128-multiple tile.
    assert length % l_tile == 0, "l_tile must divide L"
    if length // l_tile > 1:
        assert l_tile % 128 == 0, "L tiles must be lane-aligned when tiling"
    return batch_tile, l_tile


def block_forward(x, conv_w, conv_b, bn_gamma, bn_beta, *,
                  matmul_dtype=jnp.bfloat16, batch_tile=None, l_tile=None):
    """Forward pass of `Block`.  x: (N, Cin, L) float32 (PyTorch NCL) -> (N, Cout, L) f32."""
    del conv_b   # cancelled exactly by the train-mode BN batch-mean subtraction
    n, cin, length = x.shape
    cout, cin2, kw = conv_w.shape
    assert cin2 == cin and kw == K
    x = x.astype(jnp.float32)

    vmem_limit = _vmem_limit_bytes()
    bt, lt = _pick_tiles(n, length, vmem_limit, batch_tile, l_tile)
    g_n, g_l = n // bt, length // lt
    has_halo = g_l > 1
    h = min(128, length)                  # halo-carrier block width (full dim when L < 128)
    ratio = max(lt // h, 1)               # halo block-index stride (Lt % H == 0 when tiled)
    max_h_blk = max(length // h - 1, 0)

    w_koc = jnp.transpose(conv_w, (2, 0, 1)).astype(matmul_dtype)   # (K, Cout, Cin)

    # x views: the main tile plus (when L-tiled) two lane-aligned neighbor blocks whose
    # edge columns supply the 2-element conv halo.  Index maps clamp at the sequence ends;
    # the kernel masks those halos to zero (the conv zero-padding).
    x_specs = [pl.BlockSpec((bt, cin, lt), lambda nb, lb: (nb, 0, lb))]
    if has_halo:
        x_specs += [
            pl.BlockSpec((bt, cin, h),
                         lambda nb, lb: (nb, 0, jnp.maximum(lb * ratio - 1, 0))),
            pl.BlockSpec((bt, cin, h),
                         lambda nb, lb: (nb, 0, jnp.minimum((lb + 1) * ratio, max_h_blk))),
        ]
    w_spec = pl.BlockSpec((K, cout, cin), lambda nb, lb: (0, 0, 0))
    vec_spec = pl.BlockSpec((cout, 1), lambda nb, lb: (0, 0))
    xpad_scratch = pltpu.VMEM((cin, lt + 2 * PAD), matmul_dtype)
    cparams = pltpu.CompilerParams(
        dimension_semantics=("parallel", "parallel"),   # no cross-step state in either pass
        vmem_limit_bytes=vmem_limit,
    )
    x_args = (x, x, x) if has_halo else (x,)

    # ---- Pass 1: per-block conv + shifted moments (tiny per-block output). ----
    stats = pl.pallas_call(
        functools.partial(_stats_kernel, matmul_dtype=matmul_dtype, has_halo=has_halo),
        out_shape=jax.ShapeDtypeStruct((g_n, g_l, cout, 3), jnp.float32),
        grid_spec=pltpu.PrefetchScalarGridSpec(
            num_scalar_prefetch=0,
            grid=(g_n, g_l),
            in_specs=x_specs + [w_spec],
            out_specs=pl.BlockSpec((1, 1, cout, 3), lambda nb, lb: (nb, lb, 0, 0)),
            scratch_shapes=[xpad_scratch],
        ),
        compiler_params=cparams,
    )(*x_args, w_koc)

    # ---- Tiny cross-block combine (plain JAX, O(Cout * num_blocks)). ----
    shift_b, csum_b, cssq_b = stats[..., 0], stats[..., 1], stats[..., 2]   # (Gn, Gl, Cout)
    count_blk = float(bt * lt)
    total = float(n * length)
    mean = jnp.sum(csum_b + count_blk * shift_b, axis=(0, 1)) / total       # (Cout,)
    dev = shift_b - mean
    var = jnp.sum(cssq_b + 2.0 * dev * csum_b + count_blk * dev * dev, axis=(0, 1)) / total
    inv_std = jax.lax.rsqrt(var + EPS)
    gamma = bn_gamma.astype(jnp.float32)
    beta = bn_beta.astype(jnp.float32)
    scale = (gamma * inv_std).reshape(cout, 1)                    # fused BN scale
    shift = (beta - mean * gamma * inv_std).reshape(cout, 1)      # fused BN shift
    # TODO(synk): BN running_mean/running_var buffers are not updated (forward only).

    # ---- Pass 2: recompute conv (cheaper than spilling pre-BN acts), scale/shift, ReLU. ----
    # TODO(synk): when all of x fits in VMEM, keep it resident across both passes.
    out = pl.pallas_call(
        functools.partial(_apply_kernel, matmul_dtype=matmul_dtype, has_halo=has_halo),
        out_shape=jax.ShapeDtypeStruct((n, cout, length), jnp.float32),
        grid_spec=pltpu.PrefetchScalarGridSpec(
            num_scalar_prefetch=0,
            grid=(g_n, g_l),
            in_specs=x_specs + [w_spec, vec_spec, vec_spec],
            out_specs=pl.BlockSpec((bt, cout, lt), lambda nb, lb: (nb, 0, lb)),
            scratch_shapes=[xpad_scratch],
        ),
        compiler_params=cparams,
    )(*x_args, w_koc, scale, shift)
    return out


# --------------------------------------------------------------------------------------
# Reference + self-test
# --------------------------------------------------------------------------------------
def _reference(x_ncl, w_oik, bias, gamma, beta):
    """Pure-JAX reference mirroring the PyTorch Sequential (training-mode BN)."""
    y = jax.lax.conv_general_dilated(
        x_ncl, w_oik, window_strides=(1,), padding=((PAD, PAD),),
        dimension_numbers=("NCH", "OIH", "NCH"))
    y = y + bias[None, :, None]
    mean = y.mean(axis=(0, 2), keepdims=True)
    var = ((y - mean) ** 2).mean(axis=(0, 2), keepdims=True)
    yn = (y - mean) / jnp.sqrt(var + EPS)
    yn = yn * gamma[None, :, None] + beta[None, :, None]
    return jnp.maximum(yn, 0.0)


if __name__ == "__main__":
    key = jax.random.PRNGKey(0)
    k1, k2 = jax.random.split(key)

    # ---- Case 1: module-consistent small shape (N=2, Cin=4, Cout=8, L=16). ----
    kx, kw, kb = jax.random.split(k1, 3)
    x = jax.random.normal(kx, (2, 4, 16), dtype=jnp.float32)            # PyTorch NCL input
    w = jax.random.normal(kw, (8, 4, K), dtype=jnp.float32) * 0.1       # nn.Conv1d(4, 8, 5, 1, 2)
    b = jax.random.normal(kb, (8,), dtype=jnp.float32) * 0.1
    gamma = jnp.ones((8,), jnp.float32)                                  # BatchNorm1d at __init__
    beta = jnp.zeros((8,), jnp.float32)
    ref = _reference(x, w, b, gamma, beta)

    # f32 MXU operands: tight parity with the f32 module.
    out = jax.block_until_ready(block_forward(x, w, b, gamma, beta, matmul_dtype=jnp.float32))
    assert out.shape == ref.shape
    err = float(jnp.max(jnp.abs(out - ref)))
    assert err < 1e-3, f"f32 path max abs err = {err}"

    # bf16 MXU operands (default): check against a reference with the same operand
    # quantization (tight), and loosely against the exact f32 reference (bf16 operand
    # rounding ~2^-9 through a 20-term dot bounds the deviation).
    out_bf = jax.block_until_ready(block_forward(x, w, b, gamma, beta))
    ref_bf = _reference(x.astype(jnp.bfloat16).astype(jnp.float32),
                        w.astype(jnp.bfloat16).astype(jnp.float32), b, gamma, beta)
    err_bf_q = float(jnp.max(jnp.abs(out_bf - ref_bf)))
    err_bf = float(jnp.max(jnp.abs(out_bf - ref)))
    assert err_bf_q < 2e-3, f"bf16 path (quantized ref) max abs err = {err_bf_q}"
    assert err_bf < 5e-2, f"bf16 path (f32 ref) max abs err = {err_bf}"

    # ---- Case 2: exercises L-tiling with cross-tile halos and multi-row batch blocks. ----
    kx2, kw2, kb2, kg2, kbt2 = jax.random.split(k2, 5)
    x2 = jax.random.normal(kx2, (4, 4, 256), dtype=jnp.float32)
    w2 = jax.random.normal(kw2, (8, 4, K), dtype=jnp.float32) * 0.1
    b2 = jax.random.normal(kb2, (8,), dtype=jnp.float32) * 0.1
    gamma2 = 1.0 + 0.1 * jax.random.normal(kg2, (8,), dtype=jnp.float32)
    beta2 = 0.1 * jax.random.normal(kbt2, (8,), dtype=jnp.float32)
    out2 = jax.block_until_ready(
        block_forward(x2, w2, b2, gamma2, beta2, matmul_dtype=jnp.float32, l_tile=128))
    ref2 = _reference(x2, w2, b2, gamma2, beta2)
    err2 = float(jnp.max(jnp.abs(out2 - ref2)))
    assert err2 < 1e-3, f"tiled path max abs err = {err2}"

    print("KERNEL_OK")
</pallas_src>

<mosaic_0001>
module attributes {stable_mosaic.version = 11 : i64} {
  func.func @_stats_kernel(%arg0: i32, %arg1: i32, %arg2: memref<2x4x16xf32, #tpu.memory_space<vmem>>, %arg3: memref<5x8x4xf32, #tpu.memory_space<vmem>>, %arg4: memref<1x1x8x3xf32, #tpu.memory_space<vmem>>, %arg5: memref<4x20xf32, #tpu.memory_space<vmem>>) attributes {dimension_semantics = [#tpu.dimension_semantics<parallel>, #tpu.dimension_semantics<parallel>], iteration_bounds = array<i64: 1, 1>, scalar_prefetch = 0 : i64, scratch_operands = 1 : i64, tpu.core_type = #tpu.core_type<tc>, window_params = [{transform_indices = @transform_0, window_bounds = array<i64: 2, 4, 16>}, {pipeline_mode = #tpu.pipeline_mode<synchronous>, transform_indices = @transform_1, window_bounds = array<i64: 5, 8, 4>}, {transform_indices = @transform_2, window_bounds = array<i64: 1, 1, 8, 3>}]} {
    %c0 = arith.constant 0 : index
    %c0_0 = arith.constant 0 : index
    %c0_1 = arith.constant 0 : index
    %0 = vector.load %arg2[%c0, %c0_0, %c0_1] : memref<2x4x16xf32, #tpu.memory_space<vmem>>, vector<1x4x16xf32>
    %1 = vector.shape_cast %0 : vector<1x4x16xf32> to vector<4x16xf32>
    %c0_2 = arith.constant 0 : index
    %c2 = arith.constant 2 : index
    %2 = vector.load %arg5[%c0_2, %c2] : memref<4x20xf32, #tpu.memory_space<vmem>>, vector<4x16xf32>
    tpu.vector_store %arg5[%c0_2, %c2], %1 {strides = array<i32>} : memref<4x20xf32, #tpu.memory_space<vmem>>, vector<4x16xf32>,
    %cst = arith.constant 0.000000e+00 : f32
    %3 = vector.broadcast %cst : f32 to vector<4x2xf32>
    %c0_3 = arith.constant 0 : index
    %c0_4 = arith.constant 0 : index
    %4 = vector.load %arg5[%c0_3, %c0_4] : memref<4x20xf32, #tpu.memory_space<vmem>>, vector<4x2xf32>
    tpu.vector_store %arg5[%c0_3, %c0_4], %3 {strides = array<i32>} : memref<4x20xf32, #tpu.memory_space<vmem>>, vector<4x2xf32>,
    %c0_5 = arith.constant 0 : index
    %c18 = arith.constant 18 : index
    %5 = vector.load %arg5[%c0_5, %c18] : memref<4x20xf32, #tpu.memory_space<vmem>>, vector<4x2xf32>
    tpu.vector_store %arg5[%c0_5, %c18], %3 {strides = array<i32>} : memref<4x20xf32, #tpu.memory_space<vmem>>, vector<4x2xf32>,
    %cst_6 = arith.constant 0.000000e+00 : f32
    %6 = vector.broadcast %cst_6 : f32 to vector<8x16xf32>
    %c0_7 = arith.constant 0 : index
    %c0_8 = arith.constant 0 : index
    %c0_9 = arith.constant 0 : index
    %7 = vector.load %arg3[%c0_7, %c0_8, %c0_9] : memref<5x8x4xf32, #tpu.memory_space<vmem>>, vector<1x8x4xf32>
    %8 = vector.shape_cast %7 : vector<1x8x4xf32> to vector<8x4xf32>
    %c0_10 = arith.constant 0 : index
    %c0_11 = arith.constant 0 : index
    %9 = vector.load %arg5[%c0_10, %c0_11] : memref<4x20xf32, #tpu.memory_space<vmem>>, vector<4x16xf32>
    %cst_12 = arith.constant dense<0.000000e+00> : vector<8x16xf32>
    %10 = tpu.matmul %8, %9, %cst_12 {dimension_numbers = #tpu.dot_dimension_numbers<[1], [0], [0], [1], [0, 0, 1, 1], [], []>} : vector<8x4xf32>, vector<4x16xf32>, vector<8x16xf32> -> vector<8x16xf32>
    %11 = arith.addf %6, %10 : vector<8x16xf32>
    %c1 = arith.constant 1 : index
    %c0_13 = arith.constant 0 : index
    %c0_14 = arith.constant 0 : index
    %12 = vector.load %arg3[%c1, %c0_13, %c0_14] : memref<5x8x4xf32, #tpu.memory_space<vmem>>, vector<1x8x4xf32>
    %13 = vector.shape_cast %12 : vector<1x8x4xf32> to vector<8x4xf32>
    %c0_15 = arith.constant 0 : index
    %c1_16 = arith.constant 1 : index
    %14 = vector.load %arg5[%c0_15, %c1_16] : memref<4x20xf32, #tpu.memory_space<vmem>>, vector<4x16xf32>
    %cst_17 = arith.constant dense<0.000000e+00> : vector<8x16xf32>
    %15 = tpu.matmul %13, %14, %cst_17 {dimension_numbers = #tpu.dot_dimension_numbers<[1], [0], [0], [1], [0, 0, 1, 1], [], []>} : vector<8x4xf32>, vector<4x16xf32>, vector<8x16xf32> -> vector<8x16xf32>
    %16 = arith.addf %11, %15 : vector<8x16xf32>
    %c2_18 = arith.constant 2 : index
    %c0_19 = arith.constant 0 : index
    %c0_20 = arith.constant 0 : index
    %17 = vector.load %arg3[%c2_18, %c0_19, %c0_20] : memref<5x8x4xf32, #tpu.memory_space<vmem>>, vector<1x8x4xf32>
    %18 = vector.shape_cast %17 : vector<1x8x4xf32> to vector<8x4xf32>
    %c0_21 = arith.constant 0 : index
    %c2_22 = arith.constant 2 : index
    %19 = vector.load %arg5[%c0_21, %c2_22] : memref<4x20xf32, #tpu.memory_space<vmem>>, vector<4x16xf32>
    %cst_23 = arith.constant dense<0.000000e+00> : vector<8x16xf32>
    %20 = tpu.matmul %18, %19, %cst_23 {dimension_numbers = #tpu.dot_dimension_numbers<[1], [0], [0], [1], [0, 0, 1, 1], [], []>} : vector<8x4xf32>, vector<4x16xf32>, vector<8x16xf32> -> vector<8x16xf32>
    %21 = arith.addf %16, %20 : vector<8x16xf32>
    %c3 = arith.constant 3 : index
    %c0_24 = arith.constant 0 : index
    %c0_25 = arith.constant 0 : index
    %22 = vector.load %arg3[%c3, %c0_24, %c0_25] : memref<5x8x4xf32, #tpu.memory_space<vmem>>, vector<1x8x4xf32>
    %23 = vector.shape_cast %22 : vector<1x8x4xf32> to vector<8x4xf32>
    %c0_26 = arith.constant 0 : index
    %c3_27 = arith.constant 3 : index
    %24 = vector.load %arg5[%c0_26, %c3_27] : memref<4x20xf32, #tpu.memory_space<vmem>>, vector<4x16xf32>
    %cst_28 = arith.constant dense<0.000000e+00> : vector<8x16xf32>
    %25 = tpu.matmul %23, %24, %cst_28 {dimension_numbers = #tpu.dot_dimension_numbers<[1], [0], [0], [1], [0, 0, 1, 1], [], []>} : vector<8x4xf32>, vector<4x16xf32>, vector<8x16xf32> -> vector<8x16xf32>
    %26 = arith.addf %21, %25 : vector<8x16xf32>
    %c4 = arith.constant 4 : index
    %c0_29 = arith.constant 0 : index
    %c0_30 = arith.constant 0 : index
    %27 = vector.load %arg3[%c4, %c0_29, %c0_30] : memref<5x8x4xf32, #tpu.memory_space<vmem>>, vector<1x8x4xf32>
    %28 = vector.shape_cast %27 : vector<1x8x4xf32> to vector<8x4xf32>
    %c0_31 = arith.constant 0 : index
    %c4_32 = arith.constant 4 : index
    %29 = vector.load %arg5[%c0_31, %c4_32] : memref<4x20xf32, #tpu.memory_space<vmem>>, vector<4x16xf32>
    %cst_33 = arith.constant dense<0.000000e+00> : vector<8x16xf32>
    %30 = tpu.matmul %28, %29, %cst_33 {dimension_numbers = #tpu.dot_dimension_numbers<[1], [0], [0], [1], [0, 0, 1, 1], [], []>} : vector<8x4xf32>, vector<4x16xf32>, vector<8x16xf32> -> vector<8x16xf32>
    %31 = arith.addf %26, %30 : vector<8x16xf32>
    %cst_34 = arith.constant dense<0.000000e+00> : vector<8xf32>
    %32 = vector.multi_reduction <add>, %31, %cst_34 [1] : vector<8x16xf32> to vector<8xf32>
    %33 = vector.shape_cast %32 : vector<8xf32> to vector<8x1xf32>
    %cst_35 = arith.constant 1.600000e+01 : f32
    %34 = vector.broadcast %cst_35 : f32 to vector<8x1xf32>
    %35 = arith.divf %33, %34 : vector<8x1xf32>
    %36 = vector.broadcast %35 : vector<8x1xf32> to vector<8x16xf32>
    %37 = arith.subf %31, %36 : vector<8x16xf32>
    %cst_36 = arith.constant dense<0.000000e+00> : vector<8xf32>
    %38 = vector.multi_reduction <add>, %37, %cst_36 [1] : vector<8x16xf32> to vector<8xf32>
    %39 = vector.shape_cast %38 : vector<8xf32> to vector<8x1xf32>
    %40 = arith.mulf %37, %37 : vector<8x16xf32>
    %cst_37 = arith.constant dense<0.000000e+00> : vector<8xf32>
    %41 = vector.multi_reduction <add>, %40, %cst_37 [1] : vector<8x16xf32> to vector<8xf32>
    %42 = vector.shape_cast %41 : vector<8xf32> to vector<8x1xf32>
    %c1_38 = arith.constant 1 : index
    %c0_39 = arith.constant 0 : index
    %c0_40 = arith.constant 0 : index
    %43 = vector.load %arg2[%c1_38, %c0_39, %c0_40] : memref<2x4x16xf32, #tpu.memory_space<vmem>>, vector<1x4x16xf32>
    %44 = vector.shape_cast %43 : vector<1x4x16xf32> to vector<4x16xf32>
    %c0_41 = arith.constant 0 : index
    %c2_42 = arith.constant 2 : index
    %45 = vector.load %arg5[%c0_41, %c2_42] : memref<4x20xf32, #tpu.memory_space<vmem>>, vector<4x16xf32>
    tpu.vector_store %arg5[%c0_41, %c2_42], %44 {strides = array<i32>} : memref<4x20xf32, #tpu.memory_space<vmem>>, vector<4x16xf32>,
    %cst_43 = arith.constant 0.000000e+00 : f32
    %46 = vector.broadcast %cst_43 : f32 to vector<4x2xf32>
    %c0_44 = arith.constant 0 : index
    %c0_45 = arith.constant 0 : index
    %47 = vector.load %arg5[%c0_44, %c0_45] : memref<4x20xf32, #tpu.memory_space<vmem>>, vector<4x2xf32>
    tpu.vector_store %arg5[%c0_44, %c0_45], %46 {strides = array<i32>} : memref<4x20xf32, #tpu.memory_space<vmem>>, vector<4x2xf32>,
    %c0_46 = arith.constant 0 : index
    %c18_47 = arith.constant 18 : index
    %48 = vector.load %arg5[%c0_46, %c18_47] : memref<4x20xf32, #tpu.memory_space<vmem>>, vector<4x2xf32>
    tpu.vector_store %arg5[%c0_46, %c18_47], %46 {strides = array<i32>} : memref<4x20xf32, #tpu.memory_space<vmem>>, vector<4x2xf32>,
    %cst_48 = arith.constant 0.000000e+00 : f32
    %49 = vector.broadcast %cst_48 : f32 to vector<8x16xf32>
    %c0_49 = arith.constant 0 : index
    %c0_50 = arith.constant 0 : index
    %c0_51 = arith.constant 0 : index
    %50 = vector.load %arg3[%c0_49, %c0_50, %c0_51] : memref<5x8x4xf32, #tpu.memory_space<vmem>>, vector<1x8x4xf32>
    %51 = vector.shape_cast %50 : vector<1x8x4xf32> to vector<8x4xf32>
    %c0_52 = arith.constant 0 : index
    %c0_53 = arith.constant 0 : index
    %52 = vector.load %arg5[%c0_52, %c0_53] : memref<4x20xf32, #tpu.memory_space<vmem>>, vector<4x16xf32>
    %cst_54 = arith.constant dense<0.000000e+00> : vector<8x16xf32>
    %53 = tpu.matmul %51, %52, %cst_54 {dimension_numbers = #tpu.dot_dimension_numbers<[1], [0], [0], [1], [0, 0, 1, 1], [], []>} : vector<8x4xf32>, vector<4x16xf32>, vector<8x16xf32> -> vector<8x16xf32>
    %54 = arith.addf %49, %53 : vector<8x16xf32>
    %c1_55 = arith.constant 1 : index
    %c0_56 = arith.constant 0 : index
    %c0_57 = arith.constant 0 : index
    %55 = vector.load %arg3[%c1_55, %c0_56, %c0_57] : memref<5x8x4xf32, #tpu.memory_space<vmem>>, vector<1x8x4xf32>
    %56 = vector.shape_cast %55 : vector<1x8x4xf32> to vector<8x4xf32>
    %c0_58 = arith.constant 0 : index
    %c1_59 = arith.constant 1 : index
    %57 = vector.load %arg5[%c0_58, %c1_59] : memref<4x20xf32, #tpu.memory_space<vmem>>, vector<4x16xf32>
    %cst_60 = arith.constant dense<0.000000e+00> : vector<8x16xf32>
    %58 = tpu.matmul %56, %57, %cst_60 {dimension_numbers = #tpu.dot_dimension_numbers<[1], [0], [0], [1], [0, 0, 1, 1], [], []>} : vector<8x4xf32>, vector<4x16xf32>, vector<8x16xf32> -> vector<8x16xf32>
    %59 = arith.addf %54, %58 : vector<8x16xf32>
    %c2_61 = arith.constant 2 : index
    %c0_62 = arith.constant 0 : index
    %c0_63 = arith.constant 0 : index
    %60 = vector.load %arg3[%c2_61, %c0_62, %c0_63] : memref<5x8x4xf32, #tpu.memory_space<vmem>>, vector<1x8x4xf32>
    %61 = vector.shape_cast %60 : vector<1x8x4xf32> to vector<8x4xf32>
    %c0_64 = arith.constant 0 : index
    %c2_65 = arith.constant 2 : index
    %62 = vector.load %arg5[%c0_64, %c2_65] : memref<4x20xf32, #tpu.memory_space<vmem>>, vector<4x16xf32>
    %cst_66 = arith.constant dense<0.000000e+00> : vector<8x16xf32>
    %63 = tpu.matmul %61, %62, %cst_66 {dimension_numbers = #tpu.dot_dimension_numbers<[1], [0], [0], [1], [0, 0, 1, 1], [], []>} : vector<8x4xf32>, vector<4x16xf32>, vector<8x16xf32> -> vector<8x16xf32>
    %64 = arith.addf %59, %63 : vector<8x16xf32>
    %c3_67 = arith.constant 3 : index
    %c0_68 = arith.constant 0 : index
    %c0_69 = arith.constant 0 : index
    %65 = vector.load %arg3[%c3_67, %c0_68, %c0_69] : memref<5x8x4xf32, #tpu.memory_space<vmem>>, vector<1x8x4xf32>
    %66 = vector.shape_cast %65 : vector<1x8x4xf32> to vector<8x4xf32>
    %c0_70 = arith.constant 0 : index
    %c3_71 = arith.constant 3 : index
    %67 = vector.load %arg5[%c0_70, %c3_71] : memref<4x20xf32, #tpu.memory_space<vmem>>, vector<4x16xf32>
    %cst_72 = arith.constant dense<0.000000e+00> : vector<8x16xf32>
    %68 = tpu.matmul %66, %67, %cst_72 {dimension_numbers = #tpu.dot_dimension_numbers<[1], [0], [0], [1], [0, 0, 1, 1], [], []>} : vector<8x4xf32>, vector<4x16xf32>, vector<8x16xf32> -> vector<8x16xf32>
    %69 = arith.addf %64, %68 : vector<8x16xf32>
    %c4_73 = arith.constant 4 : index
    %c0_74 = arith.constant 0 : index
    %c0_75 = arith.constant 0 : index
    %70 = vector.load %arg3[%c4_73, %c0_74, %c0_75] : memref<5x8x4xf32, #tpu.memory_space<vmem>>, vector<1x8x4xf32>
    %71 = vector.shape_cast %70 : vector<1x8x4xf32> to vector<8x4xf32>
    %c0_76 = arith.constant 0 : index
    %c4_77 = arith.constant 4 : index
    %72 = vector.load %arg5[%c0_76, %c4_77] : memref<4x20xf32, #tpu.memory_space<vmem>>, vector<4x16xf32>
    %cst_78 = arith.constant dense<0.000000e+00> : vector<8x16xf32>
    %73 = tpu.matmul %71, %72, %cst_78 {dimension_numbers = #tpu.dot_dimension_numbers<[1], [0], [0], [1], [0, 0, 1, 1], [], []>} : vector<8x4xf32>, vector<4x16xf32>, vector<8x16xf32> -> vector<8x16xf32>
    %74 = arith.addf %69, %73 : vector<8x16xf32>
    %75 = vector.broadcast %35 : vector<8x1xf32> to vector<8x16xf32>
    %76 = arith.subf %74, %75 : vector<8x16xf32>
    %cst_79 = arith.constant dense<0.000000e+00> : vector<8xf32>
    %77 = vector.multi_reduction <add>, %76, %cst_79 [1] : vector<8x16xf32> to vector<8xf32>
    %78 = vector.shape_cast %77 : vector<8xf32> to vector<8x1xf32>
    %79 = arith.mulf %76, %76 : vector<8x16xf32>
    %cst_80 = arith.constant dense<0.000000e+00> : vector<8xf32>
    %80 = vector.multi_reduction <add>, %79, %cst_80 [1] : vector<8x16xf32> to vector<8xf32>
    %81 = vector.shape_cast %80 : vector<8xf32> to vector<8x1xf32>
    %82 = arith.addf %39, %78 : vector<8x1xf32>
    %83 = arith.addf %42, %81 : vector<8x1xf32>
    %c0_81 = arith.constant 0 : index
    %c0_82 = arith.constant 0 : index
    %c0_83 = arith.constant 0 : index
    %c0_84 = arith.constant 0 : index
    %84 = vector.load %arg4[%c0_81, %c0_82, %c0_83, %c0_84] : memref<1x1x8x3xf32, #tpu.memory_space<vmem>>, vector<1x1x8x1xf32>
    %85 = vector.shape_cast %84 : vector<1x1x8x1xf32> to vector<8x1xf32>
    %86 = vector.shape_cast %35 : vector<8x1xf32> to vector<1x1x8x1xf32>
    tpu.vector_store %arg4[%c0_81, %c0_82, %c0_83, %c0_84], %86 {strides = array<i32>} : memref<1x1x8x3xf32, #tpu.memory_space<vmem>>, vector<1x1x8x1xf32>,
    %c0_85 = arith.constant 0 : index
    %c0_86 = arith.constant 0 : index
    %c0_87 = arith.constant 0 : index
    %c1_88 = arith.constant 1 : index
    %87 = vector.load %arg4[%c0_85, %c0_86, %c0_87, %c1_88] : memref<1x1x8x3xf32, #tpu.memory_space<vmem>>, vector<1x1x8x1xf32>
    %88 = vector.shape_cast %87 : vector<1x1x8x1xf32> to vector<8x1xf32>
    %89 = vector.shape_cast %82 : vector<8x1xf32> to vector<1x1x8x1xf32>
    tpu.vector_store %arg4[%c0_85, %c0_86, %c0_87, %c1_88], %89 {strides = array<i32>} : memref<1x1x8x3xf32, #tpu.memory_space<vmem>>, vector<1x1x8x1xf32>,
    %c0_89 = arith.constant 0 : index
    %c0_90 = arith.constant 0 : index
    %c0_91 = arith.constant 0 : index
    %c2_92 = arith.constant 2 : index
    %90 = vector.load %arg4[%c0_89, %c0_90, %c0_91, %c2_92] : memref<1x1x8x3xf32, #tpu.memory_space<vmem>>, vector<1x1x8x1xf32>
    %91 = vector.shape_cast %90 : vector<1x1x8x1xf32> to vector<8x1xf32>
    %92 = vector.shape_cast %83 : vector<8x1xf32> to vector<1x1x8x1xf32>
    tpu.vector_store %arg4[%c0_89, %c0_90, %c0_91, %c2_92], %92 {strides = array<i32>} : memref<1x1x8x3xf32, #tpu.memory_space<vmem>>, vector<1x1x8x1xf32>,
    return
  }
  func.func @transform_0(%arg0: i32, %arg1: i32) -> (i32, i32, i32) {
    %c0_i32 = arith.constant 0 : i32
    %c0_i32_0 = arith.constant 0 : i32
    return %arg0, %c0_i32, %arg1 : i32, i32, i32
  }
  func.func @transform_1(%arg0: i32, %arg1: i32) -> (i32, i32, i32) {
    %c0_i32 = arith.constant 0 : i32
    %c0_i32_0 = arith.constant 0 : i32
    %c0_i32_1 = arith.constant 0 : i32
    %c0_i32_2 = arith.constant 0 : i32
    return %c0_i32, %c0_i32_0, %c0_i32_1 : i32, i32, i32
  }
  func.func @transform_2(%arg0: i32, %arg1: i32) -> (i32, i32, i32, i32) {
    %c0_i32 = arith.constant 0 : i32
    %c0_i32_0 = arith.constant 0 : i32
    %c0_i32_1 = arith.constant 0 : i32
    return %arg0, %arg1, %c0_i32, %c0_i32_0 : i32, i32, i32, i32
  }
}

</mosaic_0001>

<llo_original>
// kernel: tpu_custom_call.1
$region0: #{tpu_custom_call.1}
  #allocation0 [shape = 'u32[]', space=smem, size = 0x4, offset = 0x4, fixed_abs, tag = 'smem constant byte address 0x4 - core index']
  #allocation1 [shape = 'u32[144,128]{1,0:T(1,128)}', space=vmem, size = 0x12000, scoped, tag = 'internal scratch']
  #allocation2 [shape = 'f32[4,20]{1,0:T(4,128)}', space=vmem, size = 0x800, scoped, tag = 'scratch operand']
  %s0 = inlined_call_operand.vmem [shape: f32[2,4,16], index: 0, kind: input, shape index: {}]
  %s1 = inlined_call_operand.vmem [shape: f32[5,8,4], index: 1, kind: input, shape index: {}]
  %s2 = inlined_call_operand.vmem [shape: f32[1,1,8,3], index: 2, kind: output, shape index: {}]
  %s3 = sld [smem:[#allocation0]]
  $region18: #{tpu_custom_call.1} parent=0
    _
  %s5 = ssub.s32 1, %s3
  %s6 = scalar_select 0, %s5, %s3
  // Predicated region
  $region2: #{tpu_custom_call.1} parent=0 // pred_check
    _
  $region3: #{tpu_custom_call.1} parent=0 // pred_check_branch
    %8 = sbr.rel (0) target = $region5
  $region4: #{tpu_custom_call.1} parent=0 // pred_region
    _
  $region5: #{tpu_custom_call.1} parent=0 // pred_fallthru
    _
  // Predicated region
  $region6: #{tpu_custom_call.1} parent=0 // pred_check
    _
  $region7: #{tpu_custom_call.1} parent=0 // pred_check_branch
    %10 = sbr.rel (0) target = $region9
  $region8: #{tpu_custom_call.1} parent=0 // pred_region
    _
  $region9: #{tpu_custom_call.1} parent=0 // pred_fallthru
    _
  %v11 = vld [vmem:[%s0] sm:$0xf]
  %13 = vrot.lane.b32.xlu0 %v11, 2
  %v14 = vpop.permute.xlu0 %13
  %vm16 = vcmask 142352
  %17 = vst.msk [vmem:[#allocation2] sm:$0xf] %vm16, %v14
  %vm18 = vcmask 11264
  %19 = vst.msk [vmem:[#allocation2] sm:$0xf] %vm18, 0.0
  %vm20 = vcmask 158864
  %21 = vst.msk [vmem:[#allocation2] sm:$0xf] %vm20, 0.0
  %v22 = vld [vmem:[%s1] sm:$0xff]
  %v23 = vld [vmem:[#allocation2] sm:$0xf]
  %s24 = scalar_lea.vmem %s1, 8
  %v25 = vld [vmem:[%s24] sm:$0xff]
  %27 = vrot.lane.b32.xlu0 %v23, 127
  %v28 = vpop.permute.xlu0 %27
  %vm29 = vcmask 31744
  %v31 = vsel %vm29, %v25, 0
  %vm33 = vcmask 1043456
  %v34 = vsel %vm33, %v28, 0
  %36 = vmatprep.subr.mxu0 0.0
  %37 = vmatpush1.msra.mxu0 %v34
  %38 = vmatprep.subr.mxu0 0.0
  %39 = vmatpush1.msra.mxu0 0.0
  %40 = vmatprep.subr.mxu0 0.0
  %41 = vmatpush1.msra.mxu0 0.0
  %42 = vmatprep.subr.mxu0 0.0
  %43 = vmatpush1.msra.mxu0 0.0
  %44 = vmatprep.subr.mxu0 0.0
  %45 = vmatpush1.msra.mxu0 0.0
  %46 = vmatprep.subr.mxu0 0.0
  %47 = vmatpush1.msra.mxu0 0.0
  %48 = vmatprep.subr.mxu0 0.0
  %49 = vmatpush1.msra.mxu0 0.0
  %50 = vmatprep.subr.mxu0 0.0
  %51 = vmatpush1.msra.mxu0 0.0
  %52 = vmatprep.subr.mxu0 0.0
  %53 = vmatpush1.msra.mxu0 0.0
  %54 = vmatprep.subr.mxu0 0.0
  %55 = vmatpush1.msra.mxu0 0.0
  %56 = vmatprep.subr.mxu0 0.0
  %57 = vmatpush1.msra.mxu0 0.0
  %58 = vmatprep.subr.mxu0 0.0
  %59 = vmatpush1.msra.mxu0 0.0
  %60 = vmatprep.subr.mxu0 0.0
  %61 = vmatpush1.msra.mxu0 0.0
  %62 = vmatprep.subr.mxu0 0.0
  %63 = vmatpush1.msra.mxu0 0.0
  %64 = vmatprep.subr.mxu0 0.0
  %65 = vmatpush1.msra.mxu0 0.0
  %66 = vmatprep.subr.mxu0 0.0
  %67 = vmatpush1.msra.mxu0 0.0
  %68 = vmatprep.subr.mxu0 0.0
  %69 = vmatpush1.msra.mxu0 0.0
  %70 = vmatprep.subr.mxu0 0.0
  %71 = vmatpush1.msra.mxu0 0.0
  %72 = vmatprep.subr.mxu0 0.0
  %73 = vmatpush1.msra.mxu0 0.0
  %74 = vmatprep.subr.mxu0 0.0
  %75 = vmatpush1.msra.mxu0 0.0
  %76 = vmatprep.subr.mxu0 0.0
  %77 = vmatpush1.msra.mxu0 0.0
  %78 = vmatprep.subr.mxu0 0.0
  %79 = vmatpush1.msra.mxu0 0.0
  %80 = vmatprep.subr.mxu0 0.0
  %81 = vmatpush1.msra.mxu0 0.0
  %82 = vmatprep.subr.mxu0 0.0
  %83 = vmatpush1.msra.mxu0 0.0
  %84 = vmatprep.subr.mxu0 0.0
  %85 = vmatpush1.msra.mxu0 0.0
  %86 = vmatprep.subr.mxu0 0.0
  %87 = vmatpush1.msra.mxu0 0.0
  %88 = vmatprep.subr.mxu0 0.0
  %89 = vmatpush1.msra.mxu0 0.0
  %90 = vmatprep.subr.mxu0 0.0
  %91 = vmatpush1.msra.mxu0 0.0
  %92 = vmatprep.subr.mxu0 0.0
  %93 = vmatpush1.msra.mxu0 0.0
  %94 = vmatprep.subr.mxu0 0.0
  %95 = vmatpush1.msra.mxu0 0.0
  %96 = vmatprep.subr.mxu0 0.0
  %97 = vmatpush1.msra.mxu0 0.0
  %98 = vmatprep.subr.mxu0 0.0
  %99 = vmatpush1.msra.mxu0 0.0
  %100 = vmatprep.mubr.f32.mxu0 0.0
  %101 = vmatmul.mubr.f32.gmra.mrb[0].mxu0 %v31
  %v102 = vpop.f32.mrb[0].mxu0
  %v103 = vadd.f32 0.0, %v102
  %v104 = vpop.f32.mrb[0].mxu0
  %105 = vdwg.mxu0
  %v107 = vsel %vm29, %v22, 0
  %v109 = vsel %vm33, %v23, 0
  %111 = vmatprep.subr.mxu0 0.0
  %112 = vmatpush1.msra.mxu0 %v109
  %113 = vmatprep.subr.mxu0 0.0
  %114 = vmatpush1.msra.mxu0 0.0
  %115 = vmatprep.subr.mxu0 0.0
  %116 = vmatpush1.msra.mxu0 0.0
  %117 = vmatprep.subr.mxu0 0.0
  %118 = vmatpush1.msra.mxu0 0.0
  %119 = vmatprep.subr.mxu0 0.0
  %120 = vmatpush1.msra.mxu0 0.0
  %121 = vmatprep.subr.mxu0 0.0
  %122 = vmatpush1.msra.mxu0 0.0
  %123 = vmatprep.subr.mxu0 0.0
  %124 = vmatpush1.msra.mxu0 0.0
  %125 = vmatprep.subr.mxu0 0.0
  %126 = vmatpush1.msra.mxu0 0.0
  %127 = vmatprep.subr.mxu0 0.0
  %128 = vmatpush1.msra.mxu0 0.0
  %129 = vmatprep.subr.mxu0 0.0
  %130 = vmatpush1.msra.mxu0 0.0
  %131 = vmatprep.subr.mxu0 0.0
  %132 = vmatpush1.msra.mxu0 0.0
  %133 = vmatprep.subr.mxu0 0.0
  %134 = vmatpush1.msra.mxu0 0.0
  %135 = vmatprep.subr.mxu0 0.0
  %136 = vmatpush1.msra.mxu0 0.0
  %137 = vmatprep.subr.mxu0 0.0
  %138 = vmatpush1.msra.mxu0 0.0
  %139 = vmatprep.subr.mxu0 0.0
  %140 = vmatpush1.msra.mxu0 0.0
  %141 = vmatprep.subr.mxu0 0.0
  %142 = vmatpush1.msra.mxu0 0.0
  %143 = vmatprep.subr.mxu0 0.0
  %144 = vmatpush1.msra.mxu0 0.0
  %145 = vmatprep.subr.mxu0 0.0
  %146 = vmatpush1.msra.mxu0 0.0
  %147 = vmatprep.subr.mxu0 0.0
  %148 = vmatpush1.msra.mxu0 0.0
  %149 = vmatprep.subr.mxu0 0.0
  %150 = vmatpush1.msra.mxu0 0.0
  %151 = vmatprep.subr.mxu0 0.0
  %152 = vmatpush1.msra.mxu0 0.0
  %153 = vmatprep.subr.mxu0 0.0
  %154 = vmatpush1.msra.mxu0 0.0
  %155 = vmatprep.subr.mxu0 0.0
  %156 = vmatpush1.msra.mxu0 0.0
  %157 = vmatprep.subr.mxu0 0.0
  %158 = vmatpush1.msra.mxu0 0.0
  %159 = vmatprep.subr.mxu0 0.0
  %160 = vmatpush1.msra.mxu0 0.0
  %161 = vmatprep.subr.mxu0 0.0
  %162 = vmatpush1.msra.mxu0 0.0
  %163 = vmatprep.subr.mxu0 0.0
  %164 = vmatpush1.msra.mxu0 0.0
  %165 = vmatprep.subr.mxu0 0.0
  %166 = vmatpush1.msra.mxu0 0.0
  %167 = vmatprep.subr.mxu0 0.0
  %168 = vmatpush1.msra.mxu0 0.0
  %169 = vmatprep.subr.mxu0 0.0
  %170 = vmatpush1.msra.mxu0 0.0
  %171 = vmatprep.subr.mxu0 0.0
  %172 = vmatpush1.msra.mxu0 0.0
  %173 = vmatprep.subr.mxu0 0.0
  %174 = vmatpush1.msra.mxu0 0.0
  %175 = vmatprep.mubr.f32.mxu0 0.0
  %176 = vmatmul.mubr.f32.gmra.mrb[0].mxu0 %v107
  %v177 = vpop.f32.mrb[0].mxu0
  %v178 = vadd.f32 %v103, %v177
  %v179 = vpop.f32.mrb[0].mxu0
  %180 = vdwg.mxu0
  %s181 = scalar_lea.vmem %s1, 16
  %v182 = vld [vmem:[%s181] sm:$0xff]
  %183 = vrot.lane.b32.xlu0 %v23, 126
  %v184 = vpop.permute.xlu0 %183
  %v186 = vsel %vm29, %v182, 0
  %v188 = vsel %vm33, %v184, 0
  %190 = vmatprep.subr.mxu0 0.0
  %191 = vmatpush1.msra.mxu0 %v188
  %192 = vmatprep.subr.mxu0 0.0
  %193 = vmatpush1.msra.mxu0 0.0
  %194 = vmatprep.subr.mxu0 0.0
  %195 = vmatpush1.msra.mxu0 0.0
  %196 = vmatprep.subr.mxu0 0.0
  %197 = vmatpush1.msra.mxu0 0.0
  %198 = vmatprep.subr.mxu0 0.0
  %199 = vmatpush1.msra.mxu0 0.0
  %200 = vmatprep.subr.mxu0 0.0
  %201 = vmatpush1.msra.mxu0 0.0
  %202 = vmatprep.subr.mxu0 0.0
  %203 = vmatpush1.msra.mxu0 0.0
  %204 = vmatprep.subr.mxu0 0.0
  %205 = vmatpush1.msra.mxu0 0.0
  %206 = vmatprep.subr.mxu0 0.0
  %207 = vmatpush1.msra.mxu0 0.0
  %208 = vmatprep.subr.mxu0 0.0
  %209 = vmatpush1.msra.mxu0 0.0
  %210 = vmatprep.subr.mxu0 0.0
  %211 = vmatpush1.msra.mxu0 0.0
  %212 = vmatprep.subr.mxu0 0.0
  %213 = vmatpush1.msra.mxu0 0.0
  %214 = vmatprep.subr.mxu0 0.0
  %215 = vmatpush1.msra.mxu0 0.0
  %216 = vmatprep.subr.mxu0 0.0
  %217 = vmatpush1.msra.mxu0 0.0
  %218 = vmatprep.subr.mxu0 0.0
  %219 = vmatpush1.msra.mxu0 0.0
  %220 = vmatprep.subr.mxu0 0.0
  %221 = vmatpush1.msra.mxu0 0.0
  %222 = vmatprep.subr.mxu0 0.0
  %223 = vmatpush1.msra.mxu0 0.0
  %224 = vmatprep.subr.mxu0 0.0
  %225 = vmatpush1.msra.mxu0 0.0
  %226 = vmatprep.subr.mxu0 0.0
  %227 = vmatpush1.msra.mxu0 0.0
  %228 = vmatprep.subr.mxu0 0.0
  %229 = vmatpush1.msra.mxu0 0.0
  %230 = vmatprep.subr.mxu0 0.0
  %231 = vmatpush1.msra.mxu0 0.0
  %232 = vmatprep.subr.mxu0 0.0
  %233 = vmatpush1.msra.mxu0 0.0
  %234 = vmatprep.subr.mxu0 0.0
  %235 = vmatpush1.msra.mxu0 0.0
  %236 = vmatprep.subr.mxu0 0.0
  %237 = vmatpush1.msra.mxu0 0.0
  %238 = vmatprep.subr.mxu0 0.0
  %239 = vmatpush1.msra.mxu0 0.0
  %240 = vmatprep.subr.mxu0 0.0
  %241 = vmatpush1.msra.mxu0 0.0
  %242 = vmatprep.subr.mxu0 0.0
  %243 = vmatpush1.msra.mxu0 0.0
  %244 = vmatprep.subr.mxu0 0.0
  %245 = vmatpush1.msra.mxu0 0.0
  %246 = vmatprep.subr.mxu0 0.0
  %247 = vmatpush1.msra.mxu0 0.0
  %248 = vmatprep.subr.mxu0 0.0
  %249 = vmatpush1.msra.mxu0 0.0
  %250 = vmatprep.subr.mxu0 0.0
  %251 = vmatpush1.msra.mxu0 0.0
  %252 = vmatprep.subr.mxu0 0.0
  %253 = vmatpush1.msra.mxu0 0.0
  %254 = vmatprep.mubr.f32.mxu0 0.0
  %255 = vmatmul.mubr.f32.gmra.mrb[0].mxu0 %v186
  %v256 = vpop.f32.mrb[0].mxu0
  %v257 = vadd.f32 0.0, %v256
  %v258 = vpop.f32.mrb[0].mxu0
  %259 = vdwg.mxu0
  %v260 = vadd.f32 %v178, %v257
  %s261 = scalar_lea.vmem %s1, 24
  %v262 = vld [vmem:[%s261] sm:$0xff]
  %263 = vrot.lane.b32.xlu0 %v23, 125
  %v264 = vpop.permute.xlu0 %263
  %v266 = vsel %vm29, %v262, 0
  %v268 = vsel %vm33, %v264, 0
  %270 = vmatprep.subr.mxu0 0.0
  %271 = vmatpush1.msra.mxu0 %v268
  %272 = vmatprep.subr.mxu0 0.0
  %273 = vmatpush1.msra.mxu0 0.0
  %274 = vmatprep.subr.mxu0 0.0
  %275 = vmatpush1.msra.mxu0 0.0
  %276 = vmatprep.subr.mxu0 0.0
  %277 = vmatpush1.msra.mxu0 0.0
  %278 = vmatprep.subr.mxu0 0.0
  %279 = vmatpush1.msra.mxu0 0.0
  %280 = vmatprep.subr.mxu0 0.0
  %281 = vmatpush1.msra.mxu0 0.0
  %282 = vmatprep.subr.mxu0 0.0
  %283 = vmatpush1.msra.mxu0 0.0
  %284 = vmatprep.subr.mxu0 0.0
  %285 = vmatpush1.msra.mxu0 0.0
  %286 = vmatprep.subr.mxu0 0.0
  %287 = vmatpush1.msra.mxu0 0.0
  %288 = vmatprep.subr.mxu0 0.0
  %289 = vmatpush1.msra.mxu0 0.0
  %290 = vmatprep.subr.mxu0 0.0
  %291 = vmatpush1.msra.mxu0 0.0
  %292 = vmatprep.subr.mxu0 0.0
  %293 = vmatpush1.msra.mxu0 0.0
  %294 = vmatprep.subr.mxu0 0.0
  %295 = vmatpush1.msra.mxu0 0.0
  %296 = vmatprep.subr.mxu0 0.0
  %297 = vmatpush1.msra.mxu0 0.0
  %298 = vmatprep.subr.mxu0 0.0
  %299 = vmatpush1.msra.mxu0 0.0
  %300 = vmatprep.subr.mxu0 0.0
  %301 = vmatpush1.msra.mxu0 0.0
  %302 = vmatprep.subr.mxu0 0.0
  %303 = vmatpush1.msra.mxu0 0.0
  %304 = vmatprep.subr.mxu0 0.0
  %305 = vmatpush1.msra.mxu0 0.0
  %306 = vmatprep.subr.mxu0 0.0
  %307 = vmatpush1.msra.mxu0 0.0
  %308 = vmatprep.subr.mxu0 0.0
  %309 = vmatpush1.msra.mxu0 0.0
  %310 = vmatprep.subr.mxu0 0.0
  %311 = vmatpush1.msra.mxu0 0.0
  %312 = vmatprep.subr.mxu0 0.0
  %313 = vmatpush1.msra.mxu0 0.0
  %314 = vmatprep.subr.mxu0 0.0
  %315 = vmatpush1.msra.mxu0 0.0
  %316 = vmatprep.subr.mxu0 0.0
  %317 = vmatpush1.msra.mxu0 0.0
  %318 = vmatprep.subr.mxu0 0.0
  %319 = vmatpush1.msra.mxu0 0.0
  %320 = vmatprep.subr.mxu0 0.0
  %321 = vmatpush1.msra.mxu0 0.0
  %322 = vmatprep.subr.mxu0 0.0
  %323 = vmatpush1.msra.mxu0 0.0
  %324 = vmatprep.subr.mxu0 0.0
  %325 = vmatpush1.msra.mxu0 0.0
  %326 = vmatprep.subr.mxu0 0.0
  %327 = vmatpush1.msra.mxu0 0.0
  %328 = vmatprep.subr.mxu0 0.0
  %329 = vmatpush1.msra.mxu0 0.0
  %330 = vmatprep.subr.mxu0 0.0
  %331 = vmatpush1.msra.mxu0 0.0
  %332 = vmatprep.subr.mxu0 0.0
  %333 = vmatpush1.msra.mxu0 0.0
  %334 = vmatprep.mubr.f32.mxu0 0.0
  %335 = vmatmul.mubr.f32.gmra.mrb[0].mxu0 %v266
  %v336 = vpop.f32.mrb[0].mxu0
  %v337 = vadd.f32 0.0, %v336
  %v338 = vpop.f32.mrb[0].mxu0
  %339 = vdwg.mxu0
  %v340 = vadd.f32 %v260, %v337
  %s341 = scalar_lea.vmem %s1, 32
  %v342 = vld [vmem:[%s341] sm:$0xff]
  %343 = vrot.lane.b32.xlu0 %v23, 124
  %v344 = vpop.permute.xlu0 %343
  %v346 = vsel %vm29, %v342, 0
  %v348 = vsel %vm33, %v344, 0
  %350 = vmatprep.subr.mxu0 0.0
  %351 = vmatpush1.msra.mxu0 %v348
  %352 = vmatprep.subr.mxu0 0.0
  %353 = vmatpush1.msra.mxu0 0.0
  %354 = vmatprep.subr.mxu0 0.0
  %355 = vmatpush1.msra.mxu0 0.0
  %356 = vmatprep.subr.mxu0 0.0
  %357 = vmatpush1.msra.mxu0 0.0
  %358 = vmatprep.subr.mxu0 0.0
  %359 = vmatpush1.msra.mxu0 0.0
  %360 = vmatprep.subr.mxu0 0.0
  %361 = vmatpush1.msra.mxu0 0.0
  %362 = vmatprep.subr.mxu0 0.0
  %363 = vmatpush1.msra.mxu0 0.0
  %364 = vmatprep.subr.mxu0 0.0
  %365 = vmatpush1.msra.mxu0 0.0
  %366 = vmatprep.subr.mxu0 0.0
  %367 = vmatpush1.msra.mxu0 0.0
  %368 = vmatprep.subr.mxu0 0.0
  %369 = vmatpush1.msra.mxu0 0.0
  %370 = vmatprep.subr.mxu0 0.0
  %371 = vmatpush1.msra.mxu0 0.0
  %372 = vmatprep.subr.mxu0 0.0
  %373 = vmatpush1.msra.mxu0 0.0
  %374 = vmatprep.subr.mxu0 0.0
  %375 = vmatpush1.msra.mxu0 0.0
  %376 = vmatprep.subr.mxu0 0.0
  %377 = vmatpush1.msra.mxu0 0.0
  %378 = vmatprep.subr.mxu0 0.0
  %379 = vmatpush1.msra.mxu0 0.0
  %380 = vmatprep.subr.mxu0 0.0
  %381 = vmatpush1.msra.mxu0 0.0
  %382 = vmatprep.subr.mxu0 0.0
  %383 = vmatpush1.msra.mxu0 0.0
  %384 = vmatprep.subr.mxu0 0.0
  %385 = vmatpush1.msra.mxu0 0.0
  %386 = vmatprep.subr.mxu0 0.0
  %387 = vmatpush1.msra.mxu0 0.0
  %388 = vmatprep.subr.mxu0 0.0
  %389 = vmatpush1.msra.mxu0 0.0
  %390 = vmatprep.subr.mxu0 0.0
  %391 = vmatpush1.msra.mxu0 0.0
  %392 = vmatprep.subr.mxu0 0.0
  %393 = vmatpush1.msra.mxu0 0.0
  %394 = vmatprep.subr.mxu0 0.0
  %395 = vmatpush1.msra.mxu0 0.0
  %396 = vmatprep.subr.mxu0 0.0
  %397 = vmatpush1.msra.mxu0 0.0
  %398 = vmatprep.subr.mxu0 0.0
  %399 = vmatpush1.msra.mxu0 0.0
  %400 = vmatprep.subr.mxu0 0.0
  %401 = vmatpush1.msra.mxu0 0.0
  %402 = vmatprep.subr.mxu0 0.0
  %403 = vmatpush1.msra.mxu0 0.0
  %404 = vmatprep.subr.mxu0 0.0
  %405 = vmatpush1.msra.mxu0 0.0
  %406 = vmatprep.subr.mxu0 0.0
  %407 = vmatpush1.msra.mxu0 0.0
  %408 = vmatprep.subr.mxu0 0.0
  %409 = vmatpush1.msra.mxu0 0.0
  %410 = vmatprep.subr.mxu0 0.0
  %411 = vmatpush1.msra.mxu0 0.0
  %412 = vmatprep.subr.mxu0 0.0
  %413 = vmatpush1.msra.mxu0 0.0
  %414 = vmatprep.mubr.f32.mxu0 0.0
  %415 = vmatmul.mubr.f32.gmra.mrb[0].mxu0 %v346
  %v416 = vpop.f32.mrb[0].mxu0
  %v417 = vadd.f32 0.0, %v416
  %v418 = vpop.f32.mrb[0].mxu0
  %419 = vdwg.mxu0
  %v420 = vadd.f32 %v340, %v417
  %vm421 = vcmask 130048
  %v422 = vsel %vm421, %v420, 0.0
  %423 = vadd.xlane.f32.xlu0 %v422
  %v424 = vpop.xlane.xlu0 %423
  %v425 = vrcp.pop 16.0
  %v426 = vmul.f32 %v424, %v425
  %v427 = vsub.f32 %v420, %v426
  %v428 = vsel %vm421, %v427, 0.0
  %429 = vadd.xlane.f32.xlu0 %v428
  %v430 = vpop.xlane.xlu0 %429
  %v431 = vmul.f32 %v427, %v427
  %v432 = vsel %vm421, %v431, 0.0
  %433 = vadd.xlane.f32.xlu0 %v432
  %v434 = vpop.xlane.xlu0 %433
  %s435 = scalar_lea.vmem %s0, 4
  %v436 = vld [vmem:[%s435] sm:$0xf]
  %438 = vrot.lane.b32.xlu0 %v436, 2
  %v439 = vpop.permute.xlu0 %438
  %441 = vst.msk [vmem:[#allocation2] sm:$0xf] %vm16, %v439
  %442 = vst.msk [vmem:[#allocation2] sm:$0xf] %vm18, 0.0
  %443 = vst.msk [vmem:[#allocation2] sm:$0xf] %vm20, 0.0
  %v444 = vld [vmem:[%s1] sm:$0xff]
  %v445 = vld [vmem:[#allocation2] sm:$0xf]
  %v446 = vld [vmem:[%s24] sm:$0xff]
  %448 = vrot.lane.b32.xlu0 %v445, 127
  %v449 = vpop.permute.xlu0 %448
  %v451 = vsel %vm29, %v446, 0
  %v453 = vsel %vm33, %v449, 0
  %455 = vmatprep.subr.mxu0 0.0
  %456 = vmatpush1.msra.mxu0 %v453
  %457 = vmatprep.subr.mxu0 0.0
  %458 = vmatpush1.msra.mxu0 0.0
  %459 = vmatprep.subr.mxu0 0.0
  %460 = vmatpush1.msra.mxu0 0.0
  %461 = vmatprep.subr.mxu0 0.0
  %462 = vmatpush1.msra.mxu0 0.0
  %463 = vmatprep.subr.mxu0 0.0
  %464 = vmatpush1.msra.mxu0 0.0
  %465 = vmatprep.subr.mxu0 0.0
  %466 = vmatpush1.msra.mxu0 0.0
  %467 = vmatprep.subr.mxu0 0.0
  %468 = vmatpush1.msra.mxu0 0.0
  %469 = vmatprep.subr.mxu0 0.0
  %470 = vmatpush1.msra.mxu0 0.0
  %471 = vmatprep.subr.mxu0 0.0
  %472 = vmatpush1.msra.mxu0 0.0
  %473 = vmatprep.subr.mxu0 0.0
  %474 = vmatpush1.msra.mxu0 0.0
  %475 = vmatprep.subr.mxu0 0.0
  %476 = vmatpush1.msra.mxu0 0.0
  %477 = vmatprep.subr.mxu0 0.0
  %478 = vmatpush1.msra.mxu0 0.0
  %479 = vmatprep.subr.mxu0 0.0
  %480 = vmatpush1.msra.mxu0 0.0
  %481 = vmatprep.subr.mxu0 0.0
  %482 = vmatpush1.msra.mxu0 0.0
  %483 = vmatprep.subr.mxu0 0.0
  %484 = vmatpush1.msra.mxu0 0.0
  %485 = vmatprep.subr.mxu0 0.0
  %486 = vmatpush1.msra.mxu0 0.0
  %487 = vmatprep.subr.mxu0 0.0
  %488 = vmatpush1.msra.mxu0 0.0
  %489 = vmatprep.subr.mxu0 0.0
  %490 = vmatpush1.msra.mxu0 0.0
  %491 = vmatprep.subr.mxu0 0.0
  %492 = vmatpush1.msra.mxu0 0.0
  %493 = vmatprep.subr.mxu0 0.0
  %494 = vmatpush1.msra.mxu0 0.0
  %495 = vmatprep.subr.mxu0 0.0
  %496 = vmatpush1.msra.mxu0 0.0
  %497 = vmatprep.subr.mxu0 0.0
  %498 = vmatpush1.msra.mxu0 0.0
  %499 = vmatprep.subr.mxu0 0.0
  %500 = vmatpush1.msra.mxu0 0.0
  %501 = vmatprep.subr.mxu0 0.0
  %502 = vmatpush1.msra.mxu0 0.0
  %503 = vmatprep.subr.mxu0 0.0
  %504 = vmatpush1.msra.mxu0 0.0
  %505 = vmatprep.subr.mxu0 0.0
  %506 = vmatpush1.msra.mxu0 0.0
  %507 = vmatprep.subr.mxu0 0.0
  %508 = vmatpush1.msra.mxu0 0.0
  %509 = vmatprep.subr.mxu0 0.0
  %510 = vmatpush1.msra.mxu0 0.0
  %511 = vmatprep.subr.mxu0 0.0
  %512 = vmatpush1.msra.mxu0 0.0
  %513 = vmatprep.subr.mxu0 0.0
  %514 = vmatpush1.msra.mxu0 0.0
  %515 = vmatprep.subr.mxu0 0.0
  %516 = vmatpush1.msra.mxu0 0.0
  %517 = vmatprep.subr.mxu0 0.0
  %518 = vmatpush1.msra.mxu0 0.0
  %519 = vmatprep.mubr.f32.mxu0 0.0
  %520 = vmatmul.mubr.f32.gmra.mrb[0].mxu0 %v451
  %v521 = vpop.f32.mrb[0].mxu0
  %v522 = vadd.f32 0.0, %v521
  %v523 = vpop.f32.mrb[0].mxu0
  %524 = vdwg.mxu0
  %v526 = vsel %vm29, %v444, 0
  %v528 = vsel %vm33, %v445, 0
  %530 = vmatprep.subr.mxu0 0.0
  %531 = vmatpush1.msra.mxu0 %v528
  %532 = vmatprep.subr.mxu0 0.0
  %533 = vmatpush1.msra.mxu0 0.0
  %534 = vmatprep.subr.mxu0 0.0
  %535 = vmatpush1.msra.mxu0 0.0
  %536 = vmatprep.subr.mxu0 0.0
  %537 = vmatpush1.msra.mxu0 0.0
  %538 = vmatprep.subr.mxu0 0.0
  %539 = vmatpush1.msra.mxu0 0.0
  %540 = vmatprep.subr.mxu0 0.0
  %541 = vmatpush1.msra.mxu0 0.0
  %542 = vmatprep.subr.mxu0 0.0
  %543 = vmatpush1.msra.mxu0 0.0
  %544 = vmatprep.subr.mxu0 0.0
  %545 = vmatpush1.msra.mxu0 0.0
  %546 = vmatprep.subr.mxu0 0.0
  %547 = vmatpush1.msra.mxu0 0.0
  %548 = vmatprep.subr.mxu0 0.0
  %549 = vmatpush1.msra.mxu0 0.0
  %550 = vmatprep.subr.mxu0 0.0
  %551 = vmatpush1.msra.mxu0 0.0
  %552 = vmatprep.subr.mxu0 0.0
  %553 = vmatpush1.msra.mxu0 0.0
  %554 = vmatprep.subr.mxu0 0.0
  %555 = vmatpush1.msra.mxu0 0.0
  %556 = vmatprep.subr.mxu0 0.0
  %557 = vmatpush1.msra.mxu0 0.0
  %558 = vmatprep.subr.mxu0 0.0
  %559 = vmatpush1.msra.mxu0 0.0
  %560 = vmatprep.subr.mxu0 0.0
  %561 = vmatpush1.msra.mxu0 0.0
  %562 = vmatprep.subr.mxu0 0.0
  %563 = vmatpush1.msra.mxu0 0.0
  %564 = vmatprep.subr.mxu0 0.0
  %565 = vmatpush1.msra.mxu0 0.0
  %566 = vmatprep.subr.mxu0 0.0
  %567 = vmatpush1.msra.mxu0 0.0
  %568 = vmatprep.subr.mxu0 0.0
  %569 = vmatpush1.msra.mxu0 0.0
  %570 = vmatprep.subr.mxu0 0.0
  %571 = vmatpush1.msra.mxu0 0.0
  %572 = vmatprep.subr.mxu0 0.0
  %573 = vmatpush1.msra.mxu0 0.0
  %574 = vmatprep.subr.mxu0 0.0
  %575 = vmatpush1.msra.mxu0 0.0
  %576 = vmatprep.subr.mxu0 0.0
  %577 = vmatpush1.msra.mxu0 0.0
  %578 = vmatprep.subr.mxu0 0.0
  %579 = vmatpush1.msra.mxu0 0.0
  %580 = vmatprep.subr.mxu0 0.0
  %581 = vmatpush1.msra.mxu0 0.0
  %582 = vmatprep.subr.mxu0 0.0
  %583 = vmatpush1.msra.mxu0 0.0
  %584 = vmatprep.subr.mxu0 0.0
  %585 = vmatpush1.msra.mxu0 0.0
  %586 = vmatprep.subr.mxu0 0.0
  %587 = vmatpush1.msra.mxu0 0.0
  %588 = vmatprep.subr.mxu0 0.0
  %589 = vmatpush1.msra.mxu0 0.0
  %590 = vmatprep.subr.mxu0 0.0
  %591 = vmatpush1.msra.mxu0 0.0
  %592 = vmatprep.subr.mxu0 0.0
  %593 = vmatpush1.msra.mxu0 0.0
  %594 = vmatprep.mubr.f32.mxu0 0.0
  %595 = vmatmul.mubr.f32.gmra.mrb[0].mxu0 %v526
  %v596 = vpop.f32.mrb[0].mxu0
  %v597 = vadd.f32 %v522, %v596
  %v598 = vpop.f32.mrb[0].mxu0
  %599 = vdwg.mxu0
  %v600 = vld [vmem:[%s181] sm:$0xff]
  %601 = vrot.lane.b32.xlu0 %v445, 126
  %v602 = vpop.permute.xlu0 %601
  %v604 = vsel %vm29, %v600, 0
  %v606 = vsel %vm33, %v602, 0
  %608 = vmatprep.subr.mxu0 0.0
  %609 = vmatpush1.msra.mxu0 %v606
  %610 = vmatprep.subr.mxu0 0.0
  %611 = vmatpush1.msra.mxu0 0.0
  %612 = vmatprep.subr.mxu0 0.0
  %613 = vmatpush1.msra.mxu0 0.0
  %614 = vmatprep.subr.mxu0 0.0
  %615 = vmatpush1.msra.mxu0 0.0
  %616 = vmatprep.subr.mxu0 0.0
  %617 = vmatpush1.msra.mxu0 0.0
  %618 = vmatprep.subr.mxu0 0.0
  %619 = vmatpush1.msra.mxu0 0.0
  %620 = vmatprep.subr.mxu0 0.0
  %621 = vmatpush1.msra.mxu0 0.0
  %622 = vmatprep.subr.mxu0 0.0
  %623 = vmatpush1.msra.mxu0 0.0
  %624 = vmatprep.subr.mxu0 0.0
  %625 = vmatpush1.msra.mxu0 0.0
  %626 = vmatprep.subr.mxu0 0.0
  %627 = vmatpush1.msra.mxu0 0.0
  %628 = vmatprep.subr.mxu0 0.0
  %629 = vmatpush1.msra.mxu0 0.0
  %630 = vmatprep.subr.mxu0 0.0
  %631 = vmatpush1.msra.mxu0 0.0
  %632 = vmatprep.subr.mxu0 0.0
  %633 = vmatpush1.msra.mxu0 0.0
  %634 = vmatprep.subr.mxu0 0.0
  %635 = vmatpush1.msra.mxu0 0.0
  %636 = vmatprep.subr.mxu0 0.0
  %637 = vmatpush1.msra.mxu0 0.0
  %638 = vmatprep.subr.mxu0 0.0
  %639 = vmatpush1.msra.mxu0 0.0
  %640 = vmatprep.subr.mxu0 0.0
  %641 = vmatpush1.msra.mxu0 0.0
  %642 = vmatprep.subr.mxu0 0.0
  %643 = vmatpush1.msra.mxu0 0.0
  %644 = vmatprep.subr.mxu0 0.0
  %645 = vmatpush1.msra.mxu0 0.0
  %646 = vmatprep.subr.mxu0 0.0
  %647 = vmatpush1.msra.mxu0 0.0
  %648 = vmatprep.subr.mxu0 0.0
  %649 = vmatpush1.msra.mxu0 0.0
  %650 = vmatprep.subr.mxu0 0.0
  %651 = vmatpush1.msra.mxu0 0.0
  %652 = vmatprep.subr.mxu0 0.0
  %653 = vmatpush1.msra.mxu0 0.0
  %654 = vmatprep.subr.mxu0 0.0
  %655 = vmatpush1.msra.mxu0 0.0
  %656 = vmatprep.subr.mxu0 0.0
  %657 = vmatpush1.msra.mxu0 0.0
  %658 = vmatprep.subr.mxu0 0.0
  %659 = vmatpush1.msra.mxu0 0.0
  %660 = vmatprep.subr.mxu0 0.0
  %661 = vmatpush1.msra.mxu0 0.0
  %662 = vmatprep.subr.mxu0 0.0
  %663 = vmatpush1.msra.mxu0 0.0
  %664 = vmatprep.subr.mxu0 0.0
  %665 = vmatpush1.msra.mxu0 0.0
  %666 = vmatprep.subr.mxu0 0.0
  %667 = vmatpush1.msra.mxu0 0.0
  %668 = vmatprep.subr.mxu0 0.0
  %669 = vmatpush1.msra.mxu0 0.0
  %670 = vmatprep.subr.mxu0 0.0
  %671 = vmatpush1.msra.mxu0 0.0
  %672 = vmatprep.mubr.f32.mxu0 0.0
  %673 = vmatmul.mubr.f32.gmra.mrb[0].mxu0 %v604
  %v674 = vpop.f32.mrb[0].mxu0
  %v675 = vadd.f32 0.0, %v674
  %v676 = vpop.f32.mrb[0].mxu0
  %677 = vdwg.mxu0
  %v678 = vadd.f32 %v597, %v675
  %v679 = vld [vmem:[%s261] sm:$0xff]
  %680 = vrot.lane.b32.xlu0 %v445, 125
  %v681 = vpop.permute.xlu0 %680
  %v683 = vsel %vm29, %v679, 0
  %v685 = vsel %vm33, %v681, 0
  %687 = vmatprep.subr.mxu0 0.0
  %688 = vmatpush1.msra.mxu0 %v685
  %689 = vmatprep.subr.mxu0 0.0
  %690 = vmatpush1.msra.mxu0 0.0
  %691 = vmatprep.subr.mxu0 0.0
  %692 = vmatpush1.msra.mxu0 0.0
  %693 = vmatprep.subr.mxu0 0.0
  %694 = vmatpush1.msra.mxu0 0.0
  %695 = vmatprep.subr.mxu0 0.0
  %696 = vmatpush1.msra.mxu0 0.0
  %697 = vmatprep.subr.mxu0 0.0
  %698 = vmatpush1.msra.mxu0 0.0
  %699 = vmatprep.subr.mxu0 0.0
  %700 = vmatpush1.msra.mxu0 0.0
  %701 = vmatprep.subr.mxu0 0.0
  %702 = vmatpush1.msra.mxu0 0.0
  %703 = vmatprep.subr.mxu0 0.0
  %704 = vmatpush1.msra.mxu0 0.0
  %705 = vmatprep.subr.mxu0 0.0
  %706 = vmatpush1.msra.mxu0 0.0
  %707 = vmatprep.subr.mxu0 0.0
  %708 = vmatpush1.msra.mxu0 0.0
  %709 = vmatprep.subr.mxu0 0.0
  %710 = vmatpush1.msra.mxu0 0.0
  %711 = vmatprep.subr.mxu0 0.0
  %712 = vmatpush1.msra.mxu0 0.0
  %713 = vmatprep.subr.mxu0 0.0
  %714 = vmatpush1.msra.mxu0 0.0
  %715 = vmatprep.subr.mxu0 0.0
  %716 = vmatpush1.msra.mxu0 0.0
  %717 = vmatprep.subr.mxu0 0.0
  %718 = vmatpush1.msra.mxu0 0.0
  %719 = vmatprep.subr.mxu0 0.0
  %720 = vmatpush1.msra.mxu0 0.0
  %721 = vmatprep.subr.mxu0 0.0
  %722 = vmatpush1.msra.mxu0 0.0
  %723 = vmatprep.subr.mxu0 0.0
  %724 = vmatpush1.msra.mxu0 0.0
  %725 = vmatprep.subr.mxu0 0.0
  %726 = vmatpush1.msra.mxu0 0.0
  %727 = vmatprep.subr.mxu0 0.0
  %728 = vmatpush1.msra.mxu0 0.0
  %729 = vmatprep.subr.mxu0 0.0
  %730 = vmatpush1.msra.mxu0 0.0
  %731 = vmatprep.subr.mxu0 0.0
  %732 = vmatpush1.msra.mxu0 0.0
  %733 = vmatprep.subr.mxu0 0.0
  %734 = vmatpush1.msra.mxu0 0.0
  %735 = vmatprep.subr.mxu0 0.0
  %736 = vmatpush1.msra.mxu0 0.0
  %737 = vmatprep.subr.mxu0 0.0
  %738 = vmatpush1.msra.mxu0 0.0
  %739 = vmatprep.subr.mxu0 0.0
  %740 = vmatpush1.msra.mxu0 0.0
  %741 = vmatprep.subr.mxu0 0.0
  %742 = vmatpush1.msra.mxu0 0.0
  %743 = vmatprep.subr.mxu0 0.0
  %744 = vmatpush1.msra.mxu0 0.0
  %745 = vmatprep.subr.mxu0 0.0
  %746 = vmatpush1.msra.mxu0 0.0
  %747 = vmatprep.subr.mxu0 0.0
  %748 = vmatpush1.msra.mxu0 0.0
  %749 = vmatprep.subr.mxu0 0.0
  %750 = vmatpush1.msra.mxu0 0.0
  %751 = vmatprep.mubr.f32.mxu0 0.0
  %752 = vmatmul.mubr.f32.gmra.mrb[0].mxu0 %v683
  %v753 = vpop.f32.mrb[0].mxu0
  %v754 = vadd.f32 0.0, %v753
  %v755 = vpop.f32.mrb[0].mxu0
  %756 = vdwg.mxu0
  %v757 = vadd.f32 %v678, %v754
  %v758 = vld [vmem:[%s341] sm:$0xff]
  %759 = vrot.lane.b32.xlu0 %v445, 124
  %v760 = vpop.permute.xlu0 %759
  %v762 = vsel %vm29, %v758, 0
  %v764 = vsel %vm33, %v760, 0
  %766 = vmatprep.subr.mxu0 0.0
  %767 = vmatpush1.msra.mxu0 %v764
  %768 = vmatprep.subr.mxu0 0.0
  %769 = vmatpush1.msra.mxu0 0.0
  %770 = vmatprep.subr.mxu0 0.0
  %771 = vmatpush1.msra.mxu0 0.0
  %772 = vmatprep.subr.mxu0 0.0
  %773 = vmatpush1.msra.mxu0 0.0
  %774 = vmatprep.subr.mxu0 0.0
  %775 = vmatpush1.msra.mxu0 0.0
  %776 = vmatprep.subr.mxu0 0.0
  %777 = vmatpush1.msra.mxu0 0.0
  %778 = vmatprep.subr.mxu0 0.0
  %779 = vmatpush1.msra.mxu0 0.0
  %780 = vmatprep.subr.mxu0 0.0
  %781 = vmatpush1.msra.mxu0 0.0
  %782 = vmatprep.subr.mxu0 0.0
  %783 = vmatpush1.msra.mxu0 0.0
  %784 = vmatprep.subr.mxu0 0.0
  %785 = vmatpush1.msra.mxu0 0.0
  %786 = vmatprep.subr.mxu0 0.0
  %787 = vmatpush1.msra.mxu0 0.0
  %788 = vmatprep.subr.mxu0 0.0
  %789 = vmatpush1.msra.mxu0 0.0
  %790 = vmatprep.subr.mxu0 0.0
  %791 = vmatpush1.msra.mxu0 0.0
  %792 = vmatprep.subr.mxu0 0.0
  %793 = vmatpush1.msra.mxu0 0.0
  %794 = vmatprep.subr.mxu0 0.0
  %795 = vmatpush1.msra.mxu0 0.0
  %796 = vmatprep.subr.mxu0 0.0
  %797 = vmatpush1.msra.mxu0 0.0
  %798 = vmatprep.subr.mxu0 0.0
  %799 = vmatpush1.msra.mxu0 0.0
  %800 = vmatprep.subr.mxu0 0.0
  %801 = vmatpush1.msra.mxu0 0.0
  %802 = vmatprep.subr.mxu0 0.0
  %803 = vmatpush1.msra.mxu0 0.0
  %804 = vmatprep.subr.mxu0 0.0
  %805 = vmatpush1.msra.mxu0 0.0
  %806 = vmatprep.subr.mxu0 0.0
  %807 = vmatpush1.msra.mxu0 0.0
  %808 = vmatprep.subr.mxu0 0.0
  %809 = vmatpush1.msra.mxu0 0.0
  %810 = vmatprep.subr.mxu0 0.0
  %811 = vmatpush1.msra.mxu0 0.0
  %812 = vmatprep.subr.mxu0 0.0
  %813 = vmatpush1.msra.mxu0 0.0
  %814 = vmatprep.subr.mxu0 0.0
  %815 = vmatpush1.msra.mxu0 0.0
  %816 = vmatprep.subr.mxu0 0.0
  %817 = vmatpush1.msra.mxu0 0.0
  %818 = vmatprep.subr.mxu0 0.0
  %819 = vmatpush1.msra.mxu0 0.0
  %820 = vmatprep.subr.mxu0 0.0
  %821 = vmatpush1.msra.mxu0 0.0
  %822 = vmatprep.subr.mxu0 0.0
  %823 = vmatpush1.msra.mxu0 0.0
  %824 = vmatprep.subr.mxu0 0.0
  %825 = vmatpush1.msra.mxu0 0.0
  %826 = vmatprep.subr.mxu0 0.0
  %827 = vmatpush1.msra.mxu0 0.0
  %828 = vmatprep.subr.mxu0 0.0
  %829 = vmatpush1.msra.mxu0 0.0
  %830 = vmatprep.mubr.f32.mxu0 0.0
  %831 = vmatmul.mubr.f32.gmra.mrb[0].mxu0 %v762
  %v832 = vpop.f32.mrb[0].mxu0
  %v833 = vadd.f32 0.0, %v832
  %v834 = vpop.f32.mrb[0].mxu0
  %835 = vdwg.mxu0
  %v836 = vadd.f32 %v757, %v833
  %v837 = vsub.f32 %v836, %v426
  %v838 = vsel %vm421, %v837, 0.0
  %839 = vadd.xlane.f32.xlu0 %v838
  %v840 = vpop.xlane.xlu0 %839
  %v841 = vmul.f32 %v837, %v837
  %v842 = vsel %vm421, %v841, 0.0
  %843 = vadd.xlane.f32.xlu0 %v842
  %v844 = vpop.xlane.xlu0 %843
  %v845 = vadd.f32 %v430, %v840
  %v846 = vadd.f32 %v434, %v844
  %vm847 = vcmask 7168
  %848 = vst.msk [vmem:[%s2] sm:$0xff] %vm847, %v426
  %vm849 = vcmask 15368
  %850 = vst.msk [vmem:[%s2] sm:$0xff] %vm849, %v845
  %vm851 = vcmask 23568
  %852 = vst.msk [vmem:[%s2] sm:$0xff] %vm851, %v846
  // Predicated region
  $region10: #{tpu_custom_call.1} parent=0 // pred_check
    _
  $region11: #{tpu_custom_call.1} parent=0 // pred_check_branch
    %854 = sbr.rel (0) target = $region13
  $region12: #{tpu_custom_call.1} parent=0 // pred_region
    _
  $region13: #{tpu_custom_call.1} parent=0 // pred_fallthru
    _
  // Predicated region
  $region14: #{tpu_custom_call.1} parent=0 // pred_check
    _
  $region15: #{tpu_custom_call.1} parent=0 // pred_check_branch
    %856 = sbr.rel (0) target = $region17
  $region16: #{tpu_custom_call.1} parent=0 // pred_region
    _
  $region17: #{tpu_custom_call.1} parent=0 // pred_fallthru
    _

</llo_original>
